<compile_context>
chip_gen: v5e
topology: v5e:2x2
jax: 0.10.0
libtpu: 0.0.40
codegen_flags: <defaults>
</compile_context>

<pallas_src>
import math

import jax
import jax.numpy as jnp
from jax.experimental import pallas as pl
from jax.experimental.pallas import tpu as pltpu


def _round_up(x, m):
    return ((x + m - 1) // m) * m


def _cdiv(a, b):
    return (a + b - 1) // b


# ----------------------------- kernel ---------------------------------------
def _neg_binomial_kernel(h_ref, w_ref, boff_ref, out_ref):
    # h_ref:    (TILE_B, In)     current batch tile (bf16 or f32)
    # w_ref:    (In, 2*Out)      fused [w_mu | w_sigma], VMEM-resident
    # boff_ref: (2, 2*Out) f32   row 0 = fused biases, row 1 = post-softplus offset
    # out_ref:  (TILE_B, 2*Out)  fused [mu | alpha], f32
    boff = boff_ref[...]
    lin = jnp.dot(h_ref[...], w_ref[...],
                  preferred_element_type=jnp.float32) + boff[0:1, :]
    # Numerically-stable softplus, PyTorch-style threshold at 20.
    # (jnp.where evaluates both branches -> clamp the exp argument too.)
    sp = jnp.where(lin > 20.0, lin, jnp.log1p(jnp.exp(jnp.minimum(lin, 20.0))))
    out_ref[...] = sp + boff[1:2, :]


# ----------------------- tile / VMEM sizing ----------------------------------
_MAX_TILE_B = 2048        # amortize the ~0.35 us per-grid-step overhead
_MIN_SPLIT_B = 256        # below this, a second grid step is pure overhead
_VMEM_WORKSET_CAP = 24 << 20   # keep comfortably under v7x's 64 MiB physical


def _vmem_workset_bytes(tile_b, in_dim, out_f, in_itemsize):
    return (2 * tile_b * in_dim * in_itemsize      # h tile, double-buffered
            + 2 * in_dim * out_f * in_itemsize     # fused W (assume 2 buffers)
            + 2 * 2 * out_f * 4                    # bias + offset
            + 2 * tile_b * out_f * 4               # out tile, double-buffered
            + tile_b * out_f * 4)                  # f32 matmul temp


def _choose_tile(batch, in_dim, out_f, in_itemsize):
    n_tiles = max(1, _cdiv(batch, _MAX_TILE_B))
    # v7x has two TensorCores: ensure >=2 grid steps whenever the batch is big
    # enough that splitting it is not pure per-step overhead.
    if n_tiles == 1 and batch >= _MIN_SPLIT_B:
        n_tiles = 2
    tile = _round_up(_cdiv(batch, n_tiles), 8)
    # Shrink the tile until the double-buffered working set fits the budget.
    while tile > 8 and _vmem_workset_bytes(tile, in_dim, out_f, in_itemsize) > _VMEM_WORKSET_CAP:
        n_tiles += 1
        tile = _round_up(_cdiv(batch, n_tiles), 8)
    return tile, n_tiles


# ----------------------------- wrappers --------------------------------------
def prepare_params(w_mu, b_mu, w_sigma, b_sigma, compute_dtype=jnp.bfloat16):
    """Fuse the two Linear heads once (call at parameter-init time and reuse).

    w_* : (In, Out)  (nn.Linear weight pre-transposed), b_* : (Out,) or (1, Out).
    Returns:
      w_fused: (In, 2*Out) in compute_dtype  -> one MXU push for both heads
      boff:    (2, 2*Out) f32; row 0 = biases, row 1 = post-softplus offsets
    """
    in_dim, out_dim = w_mu.shape
    w_fused = jnp.concatenate([w_mu, w_sigma], axis=1).astype(compute_dtype)
    b = jnp.concatenate([jnp.reshape(b_mu, (1, out_dim)),
                         jnp.reshape(b_sigma, (1, out_dim))],
                        axis=1).astype(jnp.float32)
    off = jnp.concatenate([jnp.zeros((1, out_dim), jnp.float32),
                           jnp.full((1, out_dim), 1e-6, jnp.float32)], axis=1)
    boff = jnp.concatenate([b, off], axis=0)                     # (2, 2*Out)
    return w_fused, boff


def negative_binomial_forward_fused(h, w_fused, boff, out_dim):
    """h: (B, In); w_fused: (In, 2*Out); boff: (2, 2*Out).  Returns (mu, alpha)."""
    batch, in_dim = h.shape
    out_f = w_fused.shape[1]                   # 2*Out, unpadded (full-dim last axis)
    compute_dtype = w_fused.dtype
    itemsize = jnp.dtype(compute_dtype).itemsize

    h = h.astype(compute_dtype)
    tile_b, n_tiles = _choose_tile(batch, in_dim, out_f, itemsize)
    b_pad = tile_b * n_tiles
    if b_pad != batch:
        h = jnp.pad(h, ((0, b_pad - batch), (0, 0)))

    workset = _vmem_workset_bytes(tile_b, in_dim, out_f, itemsize)
    vmem_limit = min(max(int(workset * 1.5) + (4 << 20), 32 << 20), 48 << 20)

    cost = pl.CostEstimate(
        flops=2 * b_pad * in_dim * out_f,
        transcendentals=2 * b_pad * out_f,               # exp + log1p per element
        bytes_accessed=(b_pad * in_dim * itemsize        # h read
                        + in_dim * out_f * itemsize      # fused W read (once)
                        + 2 * out_f * 4                  # bias/offset read
                        + b_pad * out_f * 4),            # output write
    )

    out = pl.pallas_call(
        _neg_binomial_kernel,
        out_shape=jax.ShapeDtypeStruct((b_pad, out_f), jnp.float32),
        grid=(n_tiles,),
        in_specs=[
            pl.BlockSpec((tile_b, in_dim), lambda i: (i, 0)),   # batch-tiled h
            pl.BlockSpec((in_dim, out_f), lambda i: (0, 0)),    # fused weights, resident
            pl.BlockSpec((2, out_f), lambda i: (0, 0)),         # bias + offset, resident
        ],
        out_specs=pl.BlockSpec((tile_b, out_f), lambda i: (i, 0)),
        compiler_params=pltpu.CompilerParams(
            dimension_semantics=("parallel",),
            vmem_limit_bytes=vmem_limit),
        cost_estimate=cost,
    )(h, w_fused, boff)

    mu_t = out[:batch, :out_dim]
    alpha_t = out[:batch, out_dim:out_f]
    return mu_t, alpha_t


def negative_binomial_forward(h, w_mu, b_mu, w_sigma, b_sigma,
                              compute_dtype=jnp.bfloat16):
    """Convenience wrapper matching the module.  For per-time-step inference,
    call prepare_params() once and reuse (w_fused, boff) across calls."""
    out_dim = w_mu.shape[1]
    w_fused, boff = prepare_params(w_mu, b_mu, w_sigma, b_sigma, compute_dtype)
    return negative_binomial_forward_fused(h, w_fused, boff, out_dim)


# ----------------------------- self-test --------------------------------------
if __name__ == "__main__":
    batch, input_size, output_size = 8, 32, 16

    key = jax.random.PRNGKey(0)
    k_h, k_wm, k_bm, k_ws, k_bs, k_h2 = jax.random.split(key, 6)

    h = jax.random.normal(k_h, (batch, input_size), dtype=jnp.float32)

    # nn.Linear(input_size, output_size): weight (Out, In), bias (Out,).
    # Weights are stored pre-transposed as (In, Out) for the kernel.
    bound = 1.0 / math.sqrt(float(input_size))
    w_mu = jax.random.uniform(k_wm, (input_size, output_size),
                              minval=-bound, maxval=bound, dtype=jnp.float32)
    b_mu = jax.random.uniform(k_bm, (output_size,),
                              minval=-bound, maxval=bound, dtype=jnp.float32)
    w_sigma = jax.random.uniform(k_ws, (input_size, output_size),
                                 minval=-bound, maxval=bound, dtype=jnp.float32)
    b_sigma = jax.random.uniform(k_bs, (output_size,),
                                 minval=-bound, maxval=bound, dtype=jnp.float32)

    # Reference (stable softplus == log(1+exp(x)) wherever the naive form is finite).
    mu_ref = jax.nn.softplus(h @ w_mu + b_mu)
    alpha_ref = jax.nn.softplus(h @ w_sigma + b_sigma) + 1e-6

    # 1) f32 compute path: tight match to the PyTorch-semantics reference.
    mu32, a32 = negative_binomial_forward(h, w_mu, b_mu, w_sigma, b_sigma,
                                          compute_dtype=jnp.float32)
    jax.block_until_ready((mu32, a32))
    assert mu32.shape == (batch, output_size)
    assert a32.shape == (batch, output_size)
    assert jnp.allclose(mu32, mu_ref, atol=1e-5, rtol=1e-5)
    assert jnp.allclose(a32, alpha_ref, atol=1e-5, rtol=1e-5)

    # 2) Default bf16 MXU-input path (f32 accumulation + f32 softplus): looser tol.
    mu16, a16 = negative_binomial_forward(h, w_mu, b_mu, w_sigma, b_sigma)
    jax.block_until_ready((mu16, a16))
    assert jnp.allclose(mu16, mu_ref, atol=2e-2, rtol=2e-2)
    assert jnp.allclose(a16, alpha_ref, atol=2e-2, rtol=2e-2)

    # 3) Multi-tile path: exercises batch padding + >=2 grid steps (v7x sharding).
    h2 = jax.random.normal(k_h2, (300, input_size), dtype=jnp.float32)
    mu2, a2 = negative_binomial_forward(h2, w_mu, b_mu, w_sigma, b_sigma,
                                        compute_dtype=jnp.float32)
    jax.block_until_ready((mu2, a2))
    mu2_ref = jax.nn.softplus(h2 @ w_mu + b_mu)
    a2_ref = jax.nn.softplus(h2 @ w_sigma + b_sigma) + 1e-6
    assert mu2.shape == (300, output_size)
    assert jnp.allclose(mu2, mu2_ref, atol=1e-5, rtol=1e-5)
    assert jnp.allclose(a2, a2_ref, atol=1e-5, rtol=1e-5)

    print("KERNEL_OK")
</pallas_src>

<mosaic_0001>
module attributes {stable_mosaic.version = 11 : i64} {
  func.func @_neg_binomial_kernel(%arg0: i32, %arg1: memref<8x32xf32, #tpu.memory_space<vmem>>, %arg2: memref<32x32xf32, #tpu.memory_space<vmem>>, %arg3: memref<2x32xf32, #tpu.memory_space<vmem>>, %arg4: memref<8x32xf32, #tpu.memory_space<vmem>>) attributes {dimension_semantics = [#tpu.dimension_semantics<parallel>], iteration_bounds = array<i64: 1>, scalar_prefetch = 0 : i64, scratch_operands = 0 : i64, tpu.core_type = #tpu.core_type<tc>, window_params = [{transform_indices = @transform_0, window_bounds = array<i64: 8, 32>}, {pipeline_mode = #tpu.pipeline_mode<synchronous>, transform_indices = @transform_1, window_bounds = array<i64: 32, 32>}, {pipeline_mode = #tpu.pipeline_mode<synchronous>, transform_indices = @transform_2, window_bounds = array<i64: 2, 32>}, {transform_indices = @transform_3, window_bounds = array<i64: 8, 32>}]} {
    %c0 = arith.constant 0 : index
    %c0_0 = arith.constant 0 : index
    %0 = vector.load %arg3[%c0, %c0_0] : memref<2x32xf32, #tpu.memory_space<vmem>>, vector<2x32xf32>
    %c0_1 = arith.constant 0 : index
    %c0_2 = arith.constant 0 : index
    %1 = vector.load %arg1[%c0_1, %c0_2] : memref<8x32xf32, #tpu.memory_space<vmem>>, vector<8x32xf32>
    %c0_3 = arith.constant 0 : index
    %c0_4 = arith.constant 0 : index
    %2 = vector.load %arg2[%c0_3, %c0_4] : memref<32x32xf32, #tpu.memory_space<vmem>>, vector<32x32xf32>
    %cst = arith.constant dense<0.000000e+00> : vector<8x32xf32>
    %3 = tpu.matmul %1, %2, %cst {dimension_numbers = #tpu.dot_dimension_numbers<[1], [0], [0], [1], [0, 0, 1, 1], [], []>} : vector<8x32xf32>, vector<32x32xf32>, vector<8x32xf32> -> vector<8x32xf32>
    %4 = vector.extract_strided_slice %0 {offsets = [0, 0], sizes = [1, 32], strides = [1, 1]} : vector<2x32xf32> to vector<1x32xf32>
    %5 = vector.broadcast %4 : vector<1x32xf32> to vector<8x32xf32>
    %6 = arith.addf %3, %5 : vector<8x32xf32>
    %cst_5 = arith.constant 2.000000e+01 : f32
    %7 = vector.broadcast %cst_5 : f32 to vector<8x32xf32>
    %8 = arith.cmpf ogt, %6, %7 : vector<8x32xf32>
    %cst_6 = arith.constant 2.000000e+01 : f32
    %9 = vector.broadcast %cst_6 : f32 to vector<8x32xf32>
    %10 = arith.minimumf %6, %9 : vector<8x32xf32>
    %11 = math.exp %10 : vector<8x32xf32>
    %12 = math.log1p %11 : vector<8x32xf32>
    %13 = arith.select %8, %6, %12 : vector<8x32xi1>, vector<8x32xf32>
    %14 = vector.extract_strided_slice %0 {offsets = [1, 0], sizes = [1, 32], strides = [1, 1]} : vector<2x32xf32> to vector<1x32xf32>
    %15 = vector.broadcast %14 : vector<1x32xf32> to vector<8x32xf32>
    %16 = arith.addf %13, %15 : vector<8x32xf32>
    %c0_7 = arith.constant 0 : index
    %c0_8 = arith.constant 0 : index
    %17 = vector.load %arg4[%c0_7, %c0_8] : memref<8x32xf32, #tpu.memory_space<vmem>>, vector<8x32xf32>
    tpu.vector_store %arg4[%c0_7, %c0_8], %16 {strides = array<i32>} : memref<8x32xf32, #tpu.memory_space<vmem>>, vector<8x32xf32>,
    return
  }
  func.func @transform_0(%arg0: i32) -> (i32, i32) {
    %c0_i32 = arith.constant 0 : i32
    %c0_i32_0 = arith.constant 0 : i32
    return %arg0, %c0_i32 : i32, i32
  }
  func.func @transform_1(%arg0: i32) -> (i32, i32) {
    %c0_i32 = arith.constant 0 : i32
    %c0_i32_0 = arith.constant 0 : i32
    %c0_i32_1 = arith.constant 0 : i32
    return %c0_i32, %c0_i32_0 : i32, i32
  }
  func.func @transform_2(%arg0: i32) -> (i32, i32) {
    %c0_i32 = arith.constant 0 : i32
    %c0_i32_0 = arith.constant 0 : i32
    %c0_i32_1 = arith.constant 0 : i32
    return %c0_i32, %c0_i32_0 : i32, i32
  }
  func.func @transform_3(%arg0: i32) -> (i32, i32) {
    %c0_i32 = arith.constant 0 : i32
    %c0_i32_0 = arith.constant 0 : i32
    return %arg0, %c0_i32 : i32, i32
  }
}

</mosaic_0001>

<llo_original>
// kernel: tpu_custom_call.1
$region0: #{tpu_custom_call.1}
  #allocation0 [shape = 'u32[]', space=smem, size = 0x4, offset = 0x4, fixed_abs, tag = 'smem constant byte address 0x4 - core index']
  #allocation1 [shape = 'u32[72,128]{1,0:T(1,128)}', space=vmem, size = 0x9000, scoped, tag = 'internal scratch']
  %s0 = inlined_call_operand.hbm [shape: f32[8,32], index: 0, kind: input, shape index: {}]
  %s1 = inlined_call_operand.hbm [shape: f32[32,32], index: 1, kind: input, shape index: {}]
  %s2 = inlined_call_operand.hbm [shape: f32[2,32], index: 2, kind: input, shape index: {}]
  %s3 = inlined_call_operand.hbm [shape: f32[8,32], index: 3, kind: output, shape index: {}]
  %s4 = sld [smem:[#allocation0]]
  $region34: #{tpu_custom_call.1} parent=0
    _
  %s6 = ssub.s32 1, %s4
  %s7 = scalar_select 0, %s6, %s4
  $region1: #{tpu_custom_call.1} parent=0
    #allocation2 [shape = 'u8[4096]{0}', space=vmem, size = 0x1000, scoped, tag = 'input window, operand 0, single buffered']
    #allocation3 [shape = 's32[1]{0}', space=sflag, size = 0x4, scoped, tag = 'scoped memory for tpu_custom_call.1']
    #allocation4 [shape = 's32[1]{0}', space=sflag, size = 0x4, scoped, tag = 'scoped memory for tpu_custom_call.1']
    #allocation5 [shape = 'u8[16384]{0}', space=vmem, size = 0x4000, scoped, tag = 'input window, operand 1, single buffered']
    #allocation6 [shape = 's32[1]{0}', space=sflag, size = 0x4, scoped, tag = 'scoped memory for tpu_custom_call.1']
    #allocation7 [shape = 'u8[1024]{0}', space=vmem, size = 0x400, scoped, tag = 'input window, operand 2, single buffered']
    #allocation8 [shape = 'u8[4096]{0}', space=vmem, size = 0x1000, scoped, tag = 'output window, operand 0, single buffered']
    %8 = vsyncpa [#allocation3], 0
    %9 = vsyncpa [#allocation6], 0
    %10 = vsyncpa [#allocation4], 0
    // Predicated region
    $region2: #{tpu_custom_call.1} parent=1 // pred_check
      _
    $region3: #{tpu_custom_call.1} parent=1 // pred_check_branch
      %12 = sbr.rel (0) target = $region5
    $region4: #{tpu_custom_call.1} parent=1 // pred_region
      %14 = vsyncadd [#allocation3], 0
      %s16 = sshll.u32 %s0, 4
      %s17 = int_to_ptr.hbm [resolvable:$true] %s16
      %s18 = sshll.u32 [#allocation2], 4
      %s19 = int_to_ptr.vmem [resolvable:$true] %s18
      %21 = dma.hbm_to_vmem [thread:$0]  %s17, 128, %s19, [#allocation3]
    $region5: #{tpu_custom_call.1} parent=1 // pred_fallthru
      _
    // Predicated region
    $region6: #{tpu_custom_call.1} parent=1 // pred_check
      _
    $region7: #{tpu_custom_call.1} parent=1 // pred_check_branch
      %23 = sbr.rel (0) target = $region9
    $region8: #{tpu_custom_call.1} parent=1 // pred_region
      %25 = vsyncadd [#allocation6], 0
      %s26 = sshll.u32 %s1, 4
      %s27 = int_to_ptr.hbm [resolvable:$true] %s26
      %s28 = sshll.u32 [#allocation5], 4
      %s29 = int_to_ptr.vmem [resolvable:$true] %s28
      %34 = dma.hbm_to_vmem [thread:$0]  %s27, 512, %s29, [#allocation6], 128, 128, 8
    $region9: #{tpu_custom_call.1} parent=1 // pred_fallthru
      _
    // Predicated region
    $region10: #{tpu_custom_call.1} parent=1 // pred_check
      _
    $region11: #{tpu_custom_call.1} parent=1 // pred_check_branch
      %36 = sbr.rel (0) target = $region13
    $region12: #{tpu_custom_call.1} parent=1 // pred_region
      %38 = vsyncadd [#allocation6], 0
      %s40 = sshll.u32 %s2, 4
      %s41 = int_to_ptr.hbm [resolvable:$true] %s40
      %s42 = sshll.u32 [#allocation7], 4
      %s43 = int_to_ptr.vmem [resolvable:$true] %s42
      %45 = dma.hbm_to_vmem [thread:$0]  %s41, 32, %s43, [#allocation6]
    $region13: #{tpu_custom_call.1} parent=1 // pred_fallthru
      _
    // Predicated region
    $region14: #{tpu_custom_call.1} parent=1 // pred_check
      _
    $region15: #{tpu_custom_call.1} parent=1 // pred_check_branch
      %47 = sbr.rel (0) target = $region17
    $region16: #{tpu_custom_call.1} parent=1 // pred_region
      %49 = dma.done [#allocation3], 128
    $region17: #{tpu_custom_call.1} parent=1 // pred_fallthru
      _
    // Predicated region
    $region18: #{tpu_custom_call.1} parent=1 // pred_check
      _
    $region19: #{tpu_custom_call.1} parent=1 // pred_check_branch
      %51 = sbr.rel (0) target = $region21
    $region20: #{tpu_custom_call.1} parent=1 // pred_region
      %53 = dma.done [#allocation6], 512
    $region21: #{tpu_custom_call.1} parent=1 // pred_fallthru
      _
    // Predicated region
    $region22: #{tpu_custom_call.1} parent=1 // pred_check
      _
    $region23: #{tpu_custom_call.1} parent=1 // pred_check_branch
      %55 = sbr.rel (0) target = $region25
    $region24: #{tpu_custom_call.1} parent=1 // pred_region
      %57 = dma.done [#allocation6], 32
    $region25: #{tpu_custom_call.1} parent=1 // pred_fallthru
      _
    %v58 = vld [vmem:[#allocation7] sm:$0x3]
    %v59 = vld [vmem:[#allocation2] sm:$0xff]
    %v60 = vld [vmem:[#allocation5] sm:$0xff]
    %v61 = vld [vmem:[#allocation5 + $0x8] sm:$0xff]
    %v62 = vld [vmem:[#allocation5 + $0x10] sm:$0xff]
    %v63 = vld [vmem:[#allocation5 + $0x18] sm:$0xff]
    %v64 = vperm.slane %v58, 0
    %vm65 = vcmask 261120
    %v67 = vsel %vm65, %v59, 0
    %69 = vmatpush.msra.mxu0 0.0
    %70 = vmatpush.msra.mxu0 0.0
    %71 = vmatpush.msra.mxu0 0.0
    %72 = vmatpush.msra.mxu0 0.0
    %73 = vmatpush.msra.mxu0 0.0
    %74 = vmatpush.msra.mxu0 0.0
    %75 = vmatpush.msra.mxu0 0.0
    %76 = vmatpush.msra.mxu0 0.0
    %77 = vmatpush.msra.mxu0 0.0
    %78 = vmatpush.msra.mxu0 0.0
    %79 = vmatpush.msra.mxu0 0.0
    %80 = vmatpush.msra.mxu0 0.0
    %81 = vmatpush.msra.mxu0 %v63
    %82 = vmatpush.msra.mxu0 %v62
    %83 = vmatpush.msra.mxu0 %v61
    %84 = vmatpush.msra.mxu0 %v60
    %85 = vmatmul.f32.gmra.mxu0 %v67
    %v86 = vpop.f32.mrf.mxu0
    %v87 = vadd.f32 %v64, %v86
    %88 = vdwg.mxu0
    %vm89 = vcmp.gt.f32.partialorder %v87, 20.0
    %v90 = vmin.f32 %v87, 20.0
    %v91 = vmul.f32 %v90, 1.442695
    %v92 = vpow.pop %v91
    %v93 = vadd.f32 %v92, 1.0
    %v94 = vlog2.pop %v93
    %v95 = vmul.f32 %v94, 0.6931472
    %v96 = vmul.f32 -0.5, %v92
    %v97 = vadd.f32 %v96, 1.0
    %v98 = vmul.f32 %v97, %v92
    %v99 = vand.u32 2147483647, %v92
    %vm100 = vcmp.lt.f32.partialorder %v99, 0.0004427343
    %v101 = vsel %vm100, %v98, %v95
    %v102 = vsel %vm89, %v87, %v101
    %v103 = vperm.slane %v58, 1
    %v104 = vadd.f32 %v102, %v103
    %105 = vst.msk [vmem:[#allocation8] sm:$0xff] %vm65, %v104
    // Predicated region
    $region26: #{tpu_custom_call.1} parent=1 // pred_check
      _
    $region27: #{tpu_custom_call.1} parent=1 // pred_check_branch
      %107 = sbr.rel (0) target = $region29
    $region28: #{tpu_custom_call.1} parent=1 // pred_region
      %109 = vsyncadd [#allocation4], 0
      %s111 = sshll.u32 [#allocation8], 4
      %s112 = int_to_ptr.vmem [resolvable:$true] %s111
      %s113 = sshll.u32 %s3, 4
      %s114 = int_to_ptr.hbm [resolvable:$true] %s113
      %116 = dma.vmem_to_hbm [thread:$0]  %s112, 128, %s114, [#allocation4]
    $region29: #{tpu_custom_call.1} parent=1 // pred_fallthru
      _
    // Predicated region
    $region30: #{tpu_custom_call.1} parent=1 // pred_check
      _
    $region31: #{tpu_custom_call.1} parent=1 // pred_check_branch
      %118 = sbr.rel (0) target = $region33
    $region32: #{tpu_custom_call.1} parent=1 // pred_region
      %120 = dma.done [#allocation4], 128
    $region33: #{tpu_custom_call.1} parent=1 // pred_fallthru
      _
    %121 = vsyncpa [#allocation3], 1
    %122 = vsyncpa [#allocation6], 1
    %123 = vsyncpa [#allocation4], 1

</llo_original>
